<compile_context>
chip_gen: v5e
topology: v5e:2x2
jax: 0.10.0
libtpu: 0.0.40
codegen_flags: <defaults>
</compile_context>

<pallas_src>
import functools

import jax
import jax.numpy as jnp
import numpy as np
from jax.experimental import pallas as pl
from jax.experimental.pallas import tpu as pltpu

_NEG = -1e30  # bias for padded vocab lanes (never wins max; exp underflows to 0)


def _decoder_kernel(x_ref, h0_ref, wih_ref, whh_ref, bih_ref, bhh_ref,
                    wout_ref, bout_ref,
                    lp_ref, hfin_ref, wid_ref, len_ref,
                    *, eos_id):
    H = h0_ref.shape[1]
    Vp = wout_ref.shape[1]
    T = lp_ref.shape[0]          # max_length

    # ---- loop-invariant work, hoisted out of the recurrence ------------------------
    gi = jnp.dot(x_ref[...], wih_ref[...],
                 preferred_element_type=jnp.float32) + bih_ref[...]       # (1, 3H) f32
    gi_rz = gi[:, 0:2 * H]
    gi_n = gi[:, 2 * H:3 * H]

    w_hh = whh_ref[...]                                                   # (H, 3H) bf16
    b_hh = bhh_ref[...]                                                   # (1, 3H) f32

    # ---- serial recurrence: GRU cell ONLY (nn.GRU gate order r, z, n) ---------------
    h = h0_ref[...]                                                       # (1, H) f32
    hs = []
    for _ in range(T):  # T is small and static; fully unrolled / visible to the scheduler
        gh = jnp.dot(h.astype(w_hh.dtype), w_hh,
                     preferred_element_type=jnp.float32) + b_hh           # (1, 3H) f32
        rz = jax.nn.sigmoid(gi_rz + gh[:, 0:2 * H])       # fused r,z: one EUP push
        r = rz[:, 0:H]
        z = rz[:, H:2 * H]
        n = jnp.tanh(gi_n + r * gh[:, 2 * H:3 * H])
        h = (1.0 - z) * n + z * h
        hs.append(h)
    hsteps = jnp.concatenate(hs, axis=0)                                  # (T, H) f32, vreg-resident

    # ---- batched output projection + log-softmax (off the recurrence critical path) --
    logits = jnp.dot(hsteps.astype(wout_ref.dtype), wout_ref[...],
                     preferred_element_type=jnp.float32) + bout_ref[...]  # (T, Vp) f32
    m = jnp.max(logits, axis=-1, keepdims=True)                           # (T, 1)
    shifted = logits - m
    lse = jnp.log(jnp.sum(jnp.exp(shifted), axis=-1, keepdims=True))
    lp_ref[...] = shifted - lse                                           # one (8,128) f32 tile

    # first-occurrence argmax per row (matches torch.max); reuses m from the softmax
    lane = jax.lax.broadcasted_iota(jnp.int32, (T, Vp), 1)
    word_ids = jnp.min(jnp.where(logits == m, lane, Vp),
                       axis=-1, keepdims=True)                            # (T, 1) int32
    wid_ref[...] = word_ids

    # emitted length = 1 + first row whose argmax == eos (T if eos never appears)
    row = jax.lax.broadcasted_iota(jnp.int32, (T, 1), 0)
    first_eos = jnp.min(jnp.where(word_ids == eos_id, row, T),
                        axis=0, keepdims=True)                            # (1, 1) int32
    length = jnp.minimum(first_eos + 1, T)
    len_ref[...] = length

    # final hidden = hsteps[length - 1] via a masked sublane reduce (no dynamic slice)
    sel = (row == (length - 1)).astype(hsteps.dtype)                      # (T, 1)
    hfin_ref[...] = jnp.sum(hsteps * sel, axis=0, keepdims=True)          # (1, H)


def run_decoder_steps(x, h0, w_ih, w_hh, b_ih, b_hh, w_out_p, b_out_p, *,
                      max_length, eos_id):
    """x: (1,H) bf16; h0: (1,H) f32; w_ih/w_hh: (H,3H) bf16; b_ih/b_hh: (1,3H) f32;
    w_out_p: (H,Vp) bf16; b_out_p: (1,Vp) f32."""
    H = h0.shape[1]
    Vp = w_out_p.shape[1]

    vmem = pl.BlockSpec(memory_space=pltpu.MemorySpace.VMEM)

    return pl.pallas_call(
        functools.partial(_decoder_kernel, eos_id=eos_id),
        out_shape=(
            jax.ShapeDtypeStruct((max_length, Vp), jnp.float32),  # per-step log-probs
            jax.ShapeDtypeStruct((1, H), jnp.float32),            # final hidden state
            jax.ShapeDtypeStruct((max_length, 1), jnp.int32),     # per-step argmax word ids
            jax.ShapeDtypeStruct((1, 1), jnp.int32),              # emitted length
        ),
        in_specs=[vmem] * 8,
        out_specs=(vmem, vmem, vmem, vmem),
    )(x, h0, w_ih, w_hh, b_ih, b_hh, w_out_p, b_out_p)


def init_params(key, hidden_size, output_size):
    ks = jax.random.split(key, 7)
    s = 0.1
    return {
        "embedding": s * jax.random.normal(ks[0], (output_size, hidden_size), jnp.float32),
        # stored transposed relative to PyTorch (weight_ih_l0 is (3H, H) there)
        "w_ih": s * jax.random.normal(ks[1], (hidden_size, 3 * hidden_size), jnp.float32),
        "w_hh": s * jax.random.normal(ks[2], (hidden_size, 3 * hidden_size), jnp.float32),
        "b_ih": s * jax.random.normal(ks[3], (1, 3 * hidden_size), jnp.float32),
        "b_hh": s * jax.random.normal(ks[4], (1, 3 * hidden_size), jnp.float32),
        "w_out": s * jax.random.normal(ks[5], (hidden_size, output_size), jnp.float32),
        "b_out": s * jax.random.normal(ks[6], (1, output_size), jnp.float32),
    }


@functools.partial(jax.jit, static_argnames=("max_length", "eos_id"))
def _decode_device(params, input_tok, hidden, *, max_length, eos_id):
    """Single device launch: embedding + relu glue, vocab padding, bf16 casts, Pallas kernel."""
    H = hidden.shape[-1]
    V = params["w_out"].shape[1]
    Vp = ((V + 127) // 128) * 128

    # Glue: single-token embedding gather + relu (runs once, fused into this jit).
    emb = params["embedding"][input_tok]                 # (1, 1, H)
    x = jnp.maximum(emb, 0.0).reshape(1, H).astype(jnp.bfloat16)
    h0 = hidden.reshape(1, H).astype(jnp.float32)

    # Lane-dense padding of the vocab axis (zero weight columns, -1e30 bias).
    w_out = params["w_out"]
    b_out = params["b_out"]
    if Vp != V:
        w_out = jnp.pad(w_out, ((0, 0), (0, Vp - V)))
        b_out = jnp.pad(b_out, ((0, 0), (0, Vp - V)), constant_values=_NEG)

    lp, h_fin, wid, length = run_decoder_steps(
        x, h0,
        params["w_ih"].astype(jnp.bfloat16),
        params["w_hh"].astype(jnp.bfloat16),
        params["b_ih"], params["b_hh"],
        w_out.astype(jnp.bfloat16), b_out,
        max_length=max_length, eos_id=eos_id)
    return lp[:, :V], h_fin.reshape(1, 1, H), wid.reshape(-1), length.reshape(())


def decoder_rnn_forward(params, input_tok, hidden, *, max_length, eos_id):
    """Mirrors DecoderRNN.forward: returns (sentence, hidden, decoder_output).

    input_tok: (1, 1) int32 token ids (seq=1, batch=1)
    hidden:    (1, 1, H) float32 initial GRU hidden state
    """
    lp, h_fin, wid, length = _decode_device(
        params, input_tok, hidden, max_length=max_length, eos_id=eos_id)

    # One bulk D2H copy; the host only truncates using the in-kernel eos length.
    lp_host, wid_host, n_host = jax.device_get((lp, wid, length))
    n = int(n_host)
    sentence = [int(wid_host[i]) for i in range(n)]
    decoder_output = [lp_host[i].reshape(1, 1, -1) for i in range(n)]
    return sentence, h_fin, decoder_output


def _reference_logprobs(params, input_tok, hidden, *, max_length):
    """Pure-JAX f32 reference of the per-step log-prob rows (no eos truncation)."""
    H = hidden.shape[-1]
    x = jnp.maximum(params["embedding"][input_tok], 0.0).reshape(1, H)
    h = hidden.reshape(1, H)
    gi = x @ params["w_ih"] + params["b_ih"]
    lps = []
    for _ in range(max_length):
        gh = h @ params["w_hh"] + params["b_hh"]
        r = jax.nn.sigmoid(gi[:, :H] + gh[:, :H])
        z = jax.nn.sigmoid(gi[:, H:2 * H] + gh[:, H:2 * H])
        n = jnp.tanh(gi[:, 2 * H:] + r * gh[:, 2 * H:])
        h = (1.0 - z) * n + z * h
        logits = h @ params["w_out"] + params["b_out"]
        lps.append(jax.nn.log_softmax(logits, axis=-1))
    return jnp.concatenate(lps, axis=0)   # (T, V)


if __name__ == "__main__":
    hidden_size = 32
    output_size = 40     # vocab size
    max_length = 8
    sos_id, eos_id = 0, 1

    key = jax.random.PRNGKey(0)
    k_params, k_hidden = jax.random.split(key)
    params = init_params(k_params, hidden_size, output_size)

    input_tok = jnp.array([[sos_id]], dtype=jnp.int32)                      # (1, 1)
    hidden = 0.1 * jax.random.normal(k_hidden, (1, 1, hidden_size), jnp.float32)

    sentence, final_hidden, decoder_output = decoder_rnn_forward(
        params, input_tok, hidden, max_length=max_length, eos_id=eos_id)
    jax.block_until_ready(final_hidden)

    # Shape / semantics checks
    assert 1 <= len(sentence) <= max_length
    assert len(sentence) == len(decoder_output)
    assert final_hidden.shape == (1, 1, hidden_size)
    assert decoder_output[0].shape == (1, 1, output_size)

    # Loose numerical check against the f32 pure-JAX reference (kernel uses bf16 MXU
    # operands, so tolerances are generous but still meaningful for ~[-4.3,-3.3] logprobs).
    lp_full, _, _, _ = _decode_device(
        params, input_tok, hidden, max_length=max_length, eos_id=eos_id)
    lp_ref = _reference_logprobs(params, input_tok, hidden, max_length=max_length)
    assert np.allclose(np.asarray(lp_full), np.asarray(lp_ref), atol=0.1), "logprob mismatch"

    print("KERNEL_OK")
</pallas_src>

<mosaic_0001>
module attributes {stable_mosaic.version = 11 : i64} {
  func.func @_decoder_kernel(%arg0: memref<1x32xbf16, #tpu.memory_space<vmem>>, %arg1: memref<1x32xf32, #tpu.memory_space<vmem>>, %arg2: memref<32x96xbf16, #tpu.memory_space<vmem>>, %arg3: memref<32x96xbf16, #tpu.memory_space<vmem>>, %arg4: memref<1x96xf32, #tpu.memory_space<vmem>>, %arg5: memref<1x96xf32, #tpu.memory_space<vmem>>, %arg6: memref<32x128xbf16, #tpu.memory_space<vmem>>, %arg7: memref<1x128xf32, #tpu.memory_space<vmem>>, %arg8: memref<8x128xf32, #tpu.memory_space<vmem>>, %arg9: memref<1x32xf32, #tpu.memory_space<vmem>>, %arg10: memref<8x1xi32, #tpu.memory_space<vmem>>, %arg11: memref<1x1xi32, #tpu.memory_space<vmem>>) attributes {dimension_semantics = [], scalar_prefetch = 0 : i64, scratch_operands = 0 : i64, tpu.core_type = #tpu.core_type<tc>} {
    %c0 = arith.constant 0 : index
    %c0_0 = arith.constant 0 : index
    %0 = vector.load %arg0[%c0, %c0_0] : memref<1x32xbf16, #tpu.memory_space<vmem>>, vector<1x32xbf16>
    %c0_1 = arith.constant 0 : index
    %c0_2 = arith.constant 0 : index
    %1 = vector.load %arg2[%c0_1, %c0_2] : memref<32x96xbf16, #tpu.memory_space<vmem>>, vector<32x96xbf16>
    %cst = arith.constant dense<0.000000e+00> : vector<1x96xf32>
    %2 = tpu.matmul %0, %1, %cst {dimension_numbers = #tpu.dot_dimension_numbers<[1], [0], [0], [1], [0, 0, 1, 1], [], []>} : vector<1x32xbf16>, vector<32x96xbf16>, vector<1x96xf32> -> vector<1x96xf32>
    %c0_3 = arith.constant 0 : index
    %c0_4 = arith.constant 0 : index
    %3 = vector.load %arg4[%c0_3, %c0_4] : memref<1x96xf32, #tpu.memory_space<vmem>>, vector<1x96xf32>
    %4 = arith.addf %2, %3 : vector<1x96xf32>
    %5 = vector.extract_strided_slice %4 {offsets = [0, 0], sizes = [1, 64], strides = [1, 1]} : vector<1x96xf32> to vector<1x64xf32>
    %6 = vector.extract_strided_slice %4 {offsets = [0, 64], sizes = [1, 32], strides = [1, 1]} : vector<1x96xf32> to vector<1x32xf32>
    %c0_5 = arith.constant 0 : index
    %c0_6 = arith.constant 0 : index
    %7 = vector.load %arg3[%c0_5, %c0_6] : memref<32x96xbf16, #tpu.memory_space<vmem>>, vector<32x96xbf16>
    %c0_7 = arith.constant 0 : index
    %c0_8 = arith.constant 0 : index
    %8 = vector.load %arg5[%c0_7, %c0_8] : memref<1x96xf32, #tpu.memory_space<vmem>>, vector<1x96xf32>
    %c0_9 = arith.constant 0 : index
    %c0_10 = arith.constant 0 : index
    %9 = vector.load %arg1[%c0_9, %c0_10] : memref<1x32xf32, #tpu.memory_space<vmem>>, vector<1x32xf32>
    %10 = arith.truncf %9 : vector<1x32xf32> to vector<1x32xbf16>
    %cst_11 = arith.constant dense<0.000000e+00> : vector<1x96xf32>
    %11 = tpu.matmul %10, %7, %cst_11 {dimension_numbers = #tpu.dot_dimension_numbers<[1], [0], [0], [1], [0, 0, 1, 1], [], []>} : vector<1x32xbf16>, vector<32x96xbf16>, vector<1x96xf32> -> vector<1x96xf32>
    %12 = arith.addf %11, %8 : vector<1x96xf32>
    %13 = vector.extract_strided_slice %12 {offsets = [0, 0], sizes = [1, 64], strides = [1, 1]} : vector<1x96xf32> to vector<1x64xf32>
    %14 = arith.addf %5, %13 : vector<1x64xf32>
    %15 = arith.negf %14 : vector<1x64xf32>
    %16 = math.exp %15 : vector<1x64xf32>
    %cst_12 = arith.constant 1.000000e+00 : f32
    %17 = vector.broadcast %cst_12 : f32 to vector<1x64xf32>
    %18 = arith.addf %17, %16 : vector<1x64xf32>
    %19 = arith.divf %17, %18 : vector<1x64xf32>
    %20 = vector.extract_strided_slice %19 {offsets = [0, 0], sizes = [1, 32], strides = [1, 1]} : vector<1x64xf32> to vector<1x32xf32>
    %21 = vector.extract_strided_slice %19 {offsets = [0, 32], sizes = [1, 32], strides = [1, 1]} : vector<1x64xf32> to vector<1x32xf32>
    %22 = vector.extract_strided_slice %12 {offsets = [0, 64], sizes = [1, 32], strides = [1, 1]} : vector<1x96xf32> to vector<1x32xf32>
    %23 = arith.mulf %20, %22 : vector<1x32xf32>
    %24 = arith.addf %6, %23 : vector<1x32xf32>
    %25 = math.tanh %24 : vector<1x32xf32>
    %cst_13 = arith.constant 1.000000e+00 : f32
    %26 = vector.broadcast %cst_13 : f32 to vector<1x32xf32>
    %27 = arith.subf %26, %21 : vector<1x32xf32>
    %28 = arith.mulf %27, %25 : vector<1x32xf32>
    %29 = arith.mulf %21, %9 : vector<1x32xf32>
    %30 = arith.addf %28, %29 : vector<1x32xf32>
    %31 = arith.truncf %30 : vector<1x32xf32> to vector<1x32xbf16>
    %cst_14 = arith.constant dense<0.000000e+00> : vector<1x96xf32>
    %32 = tpu.matmul %31, %7, %cst_14 {dimension_numbers = #tpu.dot_dimension_numbers<[1], [0], [0], [1], [0, 0, 1, 1], [], []>} : vector<1x32xbf16>, vector<32x96xbf16>, vector<1x96xf32> -> vector<1x96xf32>
    %33 = arith.addf %32, %8 : vector<1x96xf32>
    %34 = vector.extract_strided_slice %33 {offsets = [0, 0], sizes = [1, 64], strides = [1, 1]} : vector<1x96xf32> to vector<1x64xf32>
    %35 = arith.addf %5, %34 : vector<1x64xf32>
    %36 = arith.negf %35 : vector<1x64xf32>
    %37 = math.exp %36 : vector<1x64xf32>
    %cst_15 = arith.constant 1.000000e+00 : f32
    %38 = vector.broadcast %cst_15 : f32 to vector<1x64xf32>
    %39 = arith.addf %38, %37 : vector<1x64xf32>
    %40 = arith.divf %38, %39 : vector<1x64xf32>
    %41 = vector.extract_strided_slice %40 {offsets = [0, 0], sizes = [1, 32], strides = [1, 1]} : vector<1x64xf32> to vector<1x32xf32>
    %42 = vector.extract_strided_slice %40 {offsets = [0, 32], sizes = [1, 32], strides = [1, 1]} : vector<1x64xf32> to vector<1x32xf32>
    %43 = vector.extract_strided_slice %33 {offsets = [0, 64], sizes = [1, 32], strides = [1, 1]} : vector<1x96xf32> to vector<1x32xf32>
    %44 = arith.mulf %41, %43 : vector<1x32xf32>
    %45 = arith.addf %6, %44 : vector<1x32xf32>
    %46 = math.tanh %45 : vector<1x32xf32>
    %cst_16 = arith.constant 1.000000e+00 : f32
    %47 = vector.broadcast %cst_16 : f32 to vector<1x32xf32>
    %48 = arith.subf %47, %42 : vector<1x32xf32>
    %49 = arith.mulf %48, %46 : vector<1x32xf32>
    %50 = arith.mulf %42, %30 : vector<1x32xf32>
    %51 = arith.addf %49, %50 : vector<1x32xf32>
    %52 = arith.truncf %51 : vector<1x32xf32> to vector<1x32xbf16>
    %cst_17 = arith.constant dense<0.000000e+00> : vector<1x96xf32>
    %53 = tpu.matmul %52, %7, %cst_17 {dimension_numbers = #tpu.dot_dimension_numbers<[1], [0], [0], [1], [0, 0, 1, 1], [], []>} : vector<1x32xbf16>, vector<32x96xbf16>, vector<1x96xf32> -> vector<1x96xf32>
    %54 = arith.addf %53, %8 : vector<1x96xf32>
    %55 = vector.extract_strided_slice %54 {offsets = [0, 0], sizes = [1, 64], strides = [1, 1]} : vector<1x96xf32> to vector<1x64xf32>
    %56 = arith.addf %5, %55 : vector<1x64xf32>
    %57 = arith.negf %56 : vector<1x64xf32>
    %58 = math.exp %57 : vector<1x64xf32>
    %cst_18 = arith.constant 1.000000e+00 : f32
    %59 = vector.broadcast %cst_18 : f32 to vector<1x64xf32>
    %60 = arith.addf %59, %58 : vector<1x64xf32>
    %61 = arith.divf %59, %60 : vector<1x64xf32>
    %62 = vector.extract_strided_slice %61 {offsets = [0, 0], sizes = [1, 32], strides = [1, 1]} : vector<1x64xf32> to vector<1x32xf32>
    %63 = vector.extract_strided_slice %61 {offsets = [0, 32], sizes = [1, 32], strides = [1, 1]} : vector<1x64xf32> to vector<1x32xf32>
    %64 = vector.extract_strided_slice %54 {offsets = [0, 64], sizes = [1, 32], strides = [1, 1]} : vector<1x96xf32> to vector<1x32xf32>
    %65 = arith.mulf %62, %64 : vector<1x32xf32>
    %66 = arith.addf %6, %65 : vector<1x32xf32>
    %67 = math.tanh %66 : vector<1x32xf32>
    %cst_19 = arith.constant 1.000000e+00 : f32
    %68 = vector.broadcast %cst_19 : f32 to vector<1x32xf32>
    %69 = arith.subf %68, %63 : vector<1x32xf32>
    %70 = arith.mulf %69, %67 : vector<1x32xf32>
    %71 = arith.mulf %63, %51 : vector<1x32xf32>
    %72 = arith.addf %70, %71 : vector<1x32xf32>
    %73 = arith.truncf %72 : vector<1x32xf32> to vector<1x32xbf16>
    %cst_20 = arith.constant dense<0.000000e+00> : vector<1x96xf32>
    %74 = tpu.matmul %73, %7, %cst_20 {dimension_numbers = #tpu.dot_dimension_numbers<[1], [0], [0], [1], [0, 0, 1, 1], [], []>} : vector<1x32xbf16>, vector<32x96xbf16>, vector<1x96xf32> -> vector<1x96xf32>
    %75 = arith.addf %74, %8 : vector<1x96xf32>
    %76 = vector.extract_strided_slice %75 {offsets = [0, 0], sizes = [1, 64], strides = [1, 1]} : vector<1x96xf32> to vector<1x64xf32>
    %77 = arith.addf %5, %76 : vector<1x64xf32>
    %78 = arith.negf %77 : vector<1x64xf32>
    %79 = math.exp %78 : vector<1x64xf32>
    %cst_21 = arith.constant 1.000000e+00 : f32
    %80 = vector.broadcast %cst_21 : f32 to vector<1x64xf32>
    %81 = arith.addf %80, %79 : vector<1x64xf32>
    %82 = arith.divf %80, %81 : vector<1x64xf32>
    %83 = vector.extract_strided_slice %82 {offsets = [0, 0], sizes = [1, 32], strides = [1, 1]} : vector<1x64xf32> to vector<1x32xf32>
    %84 = vector.extract_strided_slice %82 {offsets = [0, 32], sizes = [1, 32], strides = [1, 1]} : vector<1x64xf32> to vector<1x32xf32>
    %85 = vector.extract_strided_slice %75 {offsets = [0, 64], sizes = [1, 32], strides = [1, 1]} : vector<1x96xf32> to vector<1x32xf32>
    %86 = arith.mulf %83, %85 : vector<1x32xf32>
    %87 = arith.addf %6, %86 : vector<1x32xf32>
    %88 = math.tanh %87 : vector<1x32xf32>
    %cst_22 = arith.constant 1.000000e+00 : f32
    %89 = vector.broadcast %cst_22 : f32 to vector<1x32xf32>
    %90 = arith.subf %89, %84 : vector<1x32xf32>
    %91 = arith.mulf %90, %88 : vector<1x32xf32>
    %92 = arith.mulf %84, %72 : vector<1x32xf32>
    %93 = arith.addf %91, %92 : vector<1x32xf32>
    %94 = arith.truncf %93 : vector<1x32xf32> to vector<1x32xbf16>
    %cst_23 = arith.constant dense<0.000000e+00> : vector<1x96xf32>
    %95 = tpu.matmul %94, %7, %cst_23 {dimension_numbers = #tpu.dot_dimension_numbers<[1], [0], [0], [1], [0, 0, 1, 1], [], []>} : vector<1x32xbf16>, vector<32x96xbf16>, vector<1x96xf32> -> vector<1x96xf32>
    %96 = arith.addf %95, %8 : vector<1x96xf32>
    %97 = vector.extract_strided_slice %96 {offsets = [0, 0], sizes = [1, 64], strides = [1, 1]} : vector<1x96xf32> to vector<1x64xf32>
    %98 = arith.addf %5, %97 : vector<1x64xf32>
    %99 = arith.negf %98 : vector<1x64xf32>
    %100 = math.exp %99 : vector<1x64xf32>
    %cst_24 = arith.constant 1.000000e+00 : f32
    %101 = vector.broadcast %cst_24 : f32 to vector<1x64xf32>
    %102 = arith.addf %101, %100 : vector<1x64xf32>
    %103 = arith.divf %101, %102 : vector<1x64xf32>
    %104 = vector.extract_strided_slice %103 {offsets = [0, 0], sizes = [1, 32], strides = [1, 1]} : vector<1x64xf32> to vector<1x32xf32>
    %105 = vector.extract_strided_slice %103 {offsets = [0, 32], sizes = [1, 32], strides = [1, 1]} : vector<1x64xf32> to vector<1x32xf32>
    %106 = vector.extract_strided_slice %96 {offsets = [0, 64], sizes = [1, 32], strides = [1, 1]} : vector<1x96xf32> to vector<1x32xf32>
    %107 = arith.mulf %104, %106 : vector<1x32xf32>
    %108 = arith.addf %6, %107 : vector<1x32xf32>
    %109 = math.tanh %108 : vector<1x32xf32>
    %cst_25 = arith.constant 1.000000e+00 : f32
    %110 = vector.broadcast %cst_25 : f32 to vector<1x32xf32>
    %111 = arith.subf %110, %105 : vector<1x32xf32>
    %112 = arith.mulf %111, %109 : vector<1x32xf32>
    %113 = arith.mulf %105, %93 : vector<1x32xf32>
    %114 = arith.addf %112, %113 : vector<1x32xf32>
    %115 = arith.truncf %114 : vector<1x32xf32> to vector<1x32xbf16>
    %cst_26 = arith.constant dense<0.000000e+00> : vector<1x96xf32>
    %116 = tpu.matmul %115, %7, %cst_26 {dimension_numbers = #tpu.dot_dimension_numbers<[1], [0], [0], [1], [0, 0, 1, 1], [], []>} : vector<1x32xbf16>, vector<32x96xbf16>, vector<1x96xf32> -> vector<1x96xf32>
    %117 = arith.addf %116, %8 : vector<1x96xf32>
    %118 = vector.extract_strided_slice %117 {offsets = [0, 0], sizes = [1, 64], strides = [1, 1]} : vector<1x96xf32> to vector<1x64xf32>
    %119 = arith.addf %5, %118 : vector<1x64xf32>
    %120 = arith.negf %119 : vector<1x64xf32>
    %121 = math.exp %120 : vector<1x64xf32>
    %cst_27 = arith.constant 1.000000e+00 : f32
    %122 = vector.broadcast %cst_27 : f32 to vector<1x64xf32>
    %123 = arith.addf %122, %121 : vector<1x64xf32>
    %124 = arith.divf %122, %123 : vector<1x64xf32>
    %125 = vector.extract_strided_slice %124 {offsets = [0, 0], sizes = [1, 32], strides = [1, 1]} : vector<1x64xf32> to vector<1x32xf32>
    %126 = vector.extract_strided_slice %124 {offsets = [0, 32], sizes = [1, 32], strides = [1, 1]} : vector<1x64xf32> to vector<1x32xf32>
    %127 = vector.extract_strided_slice %117 {offsets = [0, 64], sizes = [1, 32], strides = [1, 1]} : vector<1x96xf32> to vector<1x32xf32>
    %128 = arith.mulf %125, %127 : vector<1x32xf32>
    %129 = arith.addf %6, %128 : vector<1x32xf32>
    %130 = math.tanh %129 : vector<1x32xf32>
    %cst_28 = arith.constant 1.000000e+00 : f32
    %131 = vector.broadcast %cst_28 : f32 to vector<1x32xf32>
    %132 = arith.subf %131, %126 : vector<1x32xf32>
    %133 = arith.mulf %132, %130 : vector<1x32xf32>
    %134 = arith.mulf %126, %114 : vector<1x32xf32>
    %135 = arith.addf %133, %134 : vector<1x32xf32>
    %136 = arith.truncf %135 : vector<1x32xf32> to vector<1x32xbf16>
    %cst_29 = arith.constant dense<0.000000e+00> : vector<1x96xf32>
    %137 = tpu.matmul %136, %7, %cst_29 {dimension_numbers = #tpu.dot_dimension_numbers<[1], [0], [0], [1], [0, 0, 1, 1], [], []>} : vector<1x32xbf16>, vector<32x96xbf16>, vector<1x96xf32> -> vector<1x96xf32>
    %138 = arith.addf %137, %8 : vector<1x96xf32>
    %139 = vector.extract_strided_slice %138 {offsets = [0, 0], sizes = [1, 64], strides = [1, 1]} : vector<1x96xf32> to vector<1x64xf32>
    %140 = arith.addf %5, %139 : vector<1x64xf32>
    %141 = arith.negf %140 : vector<1x64xf32>
    %142 = math.exp %141 : vector<1x64xf32>
    %cst_30 = arith.constant 1.000000e+00 : f32
    %143 = vector.broadcast %cst_30 : f32 to vector<1x64xf32>
    %144 = arith.addf %143, %142 : vector<1x64xf32>
    %145 = arith.divf %143, %144 : vector<1x64xf32>
    %146 = vector.extract_strided_slice %145 {offsets = [0, 0], sizes = [1, 32], strides = [1, 1]} : vector<1x64xf32> to vector<1x32xf32>
    %147 = vector.extract_strided_slice %145 {offsets = [0, 32], sizes = [1, 32], strides = [1, 1]} : vector<1x64xf32> to vector<1x32xf32>
    %148 = vector.extract_strided_slice %138 {offsets = [0, 64], sizes = [1, 32], strides = [1, 1]} : vector<1x96xf32> to vector<1x32xf32>
    %149 = arith.mulf %146, %148 : vector<1x32xf32>
    %150 = arith.addf %6, %149 : vector<1x32xf32>
    %151 = math.tanh %150 : vector<1x32xf32>
    %cst_31 = arith.constant 1.000000e+00 : f32
    %152 = vector.broadcast %cst_31 : f32 to vector<1x32xf32>
    %153 = arith.subf %152, %147 : vector<1x32xf32>
    %154 = arith.mulf %153, %151 : vector<1x32xf32>
    %155 = arith.mulf %147, %135 : vector<1x32xf32>
    %156 = arith.addf %154, %155 : vector<1x32xf32>
    %157 = arith.truncf %156 : vector<1x32xf32> to vector<1x32xbf16>
    %cst_32 = arith.constant dense<0.000000e+00> : vector<1x96xf32>
    %158 = tpu.matmul %157, %7, %cst_32 {dimension_numbers = #tpu.dot_dimension_numbers<[1], [0], [0], [1], [0, 0, 1, 1], [], []>} : vector<1x32xbf16>, vector<32x96xbf16>, vector<1x96xf32> -> vector<1x96xf32>
    %159 = arith.addf %158, %8 : vector<1x96xf32>
    %160 = vector.extract_strided_slice %159 {offsets = [0, 0], sizes = [1, 64], strides = [1, 1]} : vector<1x96xf32> to vector<1x64xf32>
    %161 = arith.addf %5, %160 : vector<1x64xf32>
    %162 = arith.negf %161 : vector<1x64xf32>
    %163 = math.exp %162 : vector<1x64xf32>
    %cst_33 = arith.constant 1.000000e+00 : f32
    %164 = vector.broadcast %cst_33 : f32 to vector<1x64xf32>
    %165 = arith.addf %164, %163 : vector<1x64xf32>
    %166 = arith.divf %164, %165 : vector<1x64xf32>
    %167 = vector.extract_strided_slice %166 {offsets = [0, 0], sizes = [1, 32], strides = [1, 1]} : vector<1x64xf32> to vector<1x32xf32>
    %168 = vector.extract_strided_slice %166 {offsets = [0, 32], sizes = [1, 32], strides = [1, 1]} : vector<1x64xf32> to vector<1x32xf32>
    %169 = vector.extract_strided_slice %159 {offsets = [0, 64], sizes = [1, 32], strides = [1, 1]} : vector<1x96xf32> to vector<1x32xf32>
    %170 = arith.mulf %167, %169 : vector<1x32xf32>
    %171 = arith.addf %6, %170 : vector<1x32xf32>
    %172 = math.tanh %171 : vector<1x32xf32>
    %cst_34 = arith.constant 1.000000e+00 : f32
    %173 = vector.broadcast %cst_34 : f32 to vector<1x32xf32>
    %174 = arith.subf %173, %168 : vector<1x32xf32>
    %175 = arith.mulf %174, %172 : vector<1x32xf32>
    %176 = arith.mulf %168, %156 : vector<1x32xf32>
    %177 = arith.addf %175, %176 : vector<1x32xf32>
    %178 = tpu.concatenate %30, %51, %72, %93, %114, %135, %156, %177 in 0 : vector<1x32xf32>, vector<1x32xf32>, vector<1x32xf32>, vector<1x32xf32>, vector<1x32xf32>, vector<1x32xf32>, vector<1x32xf32>, vector<1x32xf32> -> vector<8x32xf32>
    %179 = arith.truncf %178 : vector<8x32xf32> to vector<8x32xbf16>
    %c0_35 = arith.constant 0 : index
    %c0_36 = arith.constant 0 : index
    %180 = vector.load %arg6[%c0_35, %c0_36] : memref<32x128xbf16, #tpu.memory_space<vmem>>, vector<32x128xbf16>
    %cst_37 = arith.constant dense<0.000000e+00> : vector<8x128xf32>
    %181 = tpu.matmul %179, %180, %cst_37 {dimension_numbers = #tpu.dot_dimension_numbers<[1], [0], [0], [1], [0, 0, 1, 1], [], []>} : vector<8x32xbf16>, vector<32x128xbf16>, vector<8x128xf32> -> vector<8x128xf32>
    %c0_38 = arith.constant 0 : index
    %c0_39 = arith.constant 0 : index
    %182 = vector.load %arg7[%c0_38, %c0_39] : memref<1x128xf32, #tpu.memory_space<vmem>>, vector<1x128xf32>
    %183 = vector.broadcast %182 : vector<1x128xf32> to vector<8x128xf32>
    %184 = arith.addf %181, %183 : vector<8x128xf32>
    %cst_40 = arith.constant dense<0xFF800000> : vector<8xf32>
    %185 = vector.multi_reduction <maximumf>, %184, %cst_40 [1] : vector<8x128xf32> to vector<8xf32>
    %186 = vector.shape_cast %185 : vector<8xf32> to vector<8x1xf32>
    %187 = vector.broadcast %186 : vector<8x1xf32> to vector<8x128xf32>
    %188 = arith.subf %184, %187 : vector<8x128xf32>
    %189 = math.exp %188 : vector<8x128xf32>
    %cst_41 = arith.constant dense<0.000000e+00> : vector<8xf32>
    %190 = vector.multi_reduction <add>, %189, %cst_41 [1] : vector<8x128xf32> to vector<8xf32>
    %191 = vector.shape_cast %190 : vector<8xf32> to vector<8x1xf32>
    %192 = math.log %191 : vector<8x1xf32>
    %193 = vector.broadcast %192 : vector<8x1xf32> to vector<8x128xf32>
    %194 = arith.subf %188, %193 : vector<8x128xf32>
    %c0_42 = arith.constant 0 : index
    %c0_43 = arith.constant 0 : index
    %195 = vector.load %arg8[%c0_42, %c0_43] : memref<8x128xf32, #tpu.memory_space<vmem>>, vector<8x128xf32>
    tpu.vector_store %arg8[%c0_42, %c0_43], %194 {strides = array<i32>} : memref<8x128xf32, #tpu.memory_space<vmem>>, vector<8x128xf32>,
    %196 = tpu.iota {dimensions = array<i32: 1>} : vector<8x128xi32>
    %197 = vector.broadcast %186 : vector<8x1xf32> to vector<8x128xf32>
    %198 = arith.cmpf oeq, %184, %197 : vector<8x128xf32>
    %c128_i32 = arith.constant 128 : i32
    %199 = vector.broadcast %c128_i32 : i32 to vector<8x128xi32>
    %200 = arith.select %198, %196, %199 : vector<8x128xi1>, vector<8x128xi32>
    %cst_44 = arith.constant dense<2147483647> : vector<8xi32>
    %201 = vector.multi_reduction <minsi>, %200, %cst_44 [1] : vector<8x128xi32> to vector<8xi32>
    %202 = vector.shape_cast %201 : vector<8xi32> to vector<8x1xi32>
    %c0_45 = arith.constant 0 : index
    %c0_46 = arith.constant 0 : index
    %203 = vector.load %arg10[%c0_45, %c0_46] : memref<8x1xi32, #tpu.memory_space<vmem>>, vector<8x1xi32>
    tpu.vector_store %arg10[%c0_45, %c0_46], %202 {strides = array<i32>} : memref<8x1xi32, #tpu.memory_space<vmem>>, vector<8x1xi32>,
    %204 = tpu.iota {dimensions = array<i32: 0>} : vector<8x1xi32>
    %c1_i32 = arith.constant 1 : i32
    %205 = vector.broadcast %c1_i32 : i32 to vector<8x1xi32>
    %206 = arith.cmpi eq, %202, %205 : vector<8x1xi32>
    %c8_i32 = arith.constant 8 : i32
    %207 = vector.broadcast %c8_i32 : i32 to vector<8x1xi32>
    %208 = arith.select %206, %204, %207 : vector<8x1xi1>, vector<8x1xi32>
    %cst_47 = arith.constant dense<2147483647> : vector<1xi32>
    %209 = vector.multi_reduction <minsi>, %208, %cst_47 [0] : vector<8x1xi32> to vector<1xi32>
    %210 = vector.shape_cast %209 : vector<1xi32> to vector<1x1xi32>
    %c1_i32_48 = arith.constant 1 : i32
    %211 = vector.broadcast %c1_i32_48 : i32 to vector<1x1xi32>
    %212 = arith.addi %210, %211 : vector<1x1xi32>
    %c8_i32_49 = arith.constant 8 : i32
    %213 = vector.broadcast %c8_i32_49 : i32 to vector<1x1xi32>
    %214 = arith.minsi %212, %213 : vector<1x1xi32>
    %c0_50 = arith.constant 0 : index
    %c0_51 = arith.constant 0 : index
    %215 = vector.load %arg11[%c0_50, %c0_51] : memref<1x1xi32, #tpu.memory_space<vmem>>, vector<1x1xi32>
    tpu.vector_store %arg11[%c0_50, %c0_51], %214 {strides = array<i32>} : memref<1x1xi32, #tpu.memory_space<vmem>>, vector<1x1xi32>,
    %c1_i32_52 = arith.constant 1 : i32
    %216 = vector.broadcast %c1_i32_52 : i32 to vector<1x1xi32>
    %217 = arith.subi %214, %216 : vector<1x1xi32>
    %218 = vector.broadcast %217 : vector<1x1xi32> to vector<8x1xi32>
    %219 = arith.cmpi eq, %204, %218 : vector<8x1xi32>
    %220 = arith.extui %219 : vector<8x1xi1> to vector<8x1xi32>
    %221 = arith.sitofp %220 : vector<8x1xi32> to vector<8x1xf32>
    %222 = vector.broadcast %221 : vector<8x1xf32> to vector<8x32xf32>
    %223 = arith.mulf %178, %222 : vector<8x32xf32>
    %cst_53 = arith.constant dense<0.000000e+00> : vector<32xf32>
    %224 = vector.multi_reduction <add>, %223, %cst_53 [0] : vector<8x32xf32> to vector<32xf32>
    %225 = vector.shape_cast %224 : vector<32xf32> to vector<1x32xf32>
    %c0_54 = arith.constant 0 : index
    %c0_55 = arith.constant 0 : index
    %226 = vector.load %arg9[%c0_54, %c0_55] : memref<1x32xf32, #tpu.memory_space<vmem>>, vector<1x32xf32>
    tpu.vector_store %arg9[%c0_54, %c0_55], %225 {strides = array<i32>} : memref<1x32xf32, #tpu.memory_space<vmem>>, vector<1x32xf32>,
    return
  }
}

</mosaic_0001>

<llo_original>
// kernel: _decode_device.1
$region0: #{_decode_device.1}
  #allocation0 [shape = 'u32[]', space=smem, size = 0x4, offset = 0x4, fixed_abs, tag = 'smem constant byte address 0x4 - core index']
  #allocation1 [shape = 'u32[72,128]{1,0:T(1,128)}', space=vmem, size = 0x9000, scoped, tag = 'internal scratch']
  %s0 = inlined_call_operand.vmem [shape: bf16[1,32], index: 0, kind: input, shape index: {}]
  %s1 = inlined_call_operand.vmem [shape: f32[1,32], index: 1, kind: input, shape index: {}]
  %s2 = inlined_call_operand.vmem [shape: bf16[32,96], index: 2, kind: input, shape index: {}]
  %s3 = inlined_call_operand.vmem [shape: bf16[32,96], index: 3, kind: input, shape index: {}]
  %s4 = inlined_call_operand.vmem [shape: f32[1,96], index: 4, kind: input, shape index: {}]
  %s5 = inlined_call_operand.vmem [shape: f32[1,96], index: 5, kind: input, shape index: {}]
  %s6 = inlined_call_operand.vmem [shape: bf16[32,128], index: 6, kind: input, shape index: {}]
  %s7 = inlined_call_operand.vmem [shape: f32[1,128], index: 7, kind: input, shape index: {}]
  %s8 = inlined_call_operand.hbm [shape: f32[8,128], index: 8, kind: output, shape index: {0}]
  %s9 = inlined_call_operand.hbm [shape: f32[1,32], index: 9, kind: output, shape index: {1}]
  %s10 = inlined_call_operand.vmem [shape: s32[8,1], index: 10, kind: output, shape index: {2}]
  %s11 = inlined_call_operand.hbm [shape: s32[1,1], index: 11, kind: output, shape index: {3}]
  %12 = xla_tuple %s8, %s9, %s10, %s11
  %s13 = sld [smem:[#allocation0]]
  $region66: #{_decode_device.1} parent=0
    _
  %s15 = ssub.s32 1, %s13
  %s16 = scalar_select 0, %s15, %s13
  $region1: #{_decode_device.1} parent=0
    #allocation2 [shape = 'u8[4096]{0}', space=vmem, size = 0x1000, scoped, tag = 'output window, operand 0, single buffered']
    #allocation3 [shape = 's32[1]{0}', space=sflag, size = 0x4, scoped, tag = 'scoped memory for _decode_device.1']
    #allocation4 [shape = 'u8[512]{0}', space=vmem, size = 0x400, scoped, tag = 'output window, operand 1, single buffered']
    #allocation5 [shape = 's32[1]{0}', space=sflag, size = 0x4, scoped, tag = 'scoped memory for _decode_device.1']
    #allocation6 [shape = 'u8[512]{0}', space=vmem, size = 0x400, scoped, tag = 'output window, operand 3, single buffered']
    %17 = vsyncpa [#allocation3], 0
    %18 = vsyncpa [#allocation5], 0
    // Predicated region
    $region2: #{_decode_device.1} parent=1 // pred_check
      _
    $region3: #{_decode_device.1} parent=1 // pred_check_branch
      %20 = sbr.rel (0) target = $region5
    $region4: #{_decode_device.1} parent=1 // pred_region
      _
    $region5: #{_decode_device.1} parent=1 // pred_fallthru
      _
    // Predicated region
    $region6: #{_decode_device.1} parent=1 // pred_check
      _
    $region7: #{_decode_device.1} parent=1 // pred_check_branch
      %22 = sbr.rel (0) target = $region9
    $region8: #{_decode_device.1} parent=1 // pred_region
      _
    $region9: #{_decode_device.1} parent=1 // pred_fallthru
      _
    // Predicated region
    $region10: #{_decode_device.1} parent=1 // pred_check
      _
    $region11: #{_decode_device.1} parent=1 // pred_check_branch
      %24 = sbr.rel (0) target = $region13
    $region12: #{_decode_device.1} parent=1 // pred_region
      _
    $region13: #{_decode_device.1} parent=1 // pred_fallthru
      _
    // Predicated region
    $region14: #{_decode_device.1} parent=1 // pred_check
      _
    $region15: #{_decode_device.1} parent=1 // pred_check_branch
      %26 = sbr.rel (0) target = $region17
    $region16: #{_decode_device.1} parent=1 // pred_region
      _
    $region17: #{_decode_device.1} parent=1 // pred_fallthru
      _
    // Predicated region
    $region18: #{_decode_device.1} parent=1 // pred_check
      _
    $region19: #{_decode_device.1} parent=1 // pred_check_branch
      %28 = sbr.rel (0) target = $region21
    $region20: #{_decode_device.1} parent=1 // pred_region
      _
    $region21: #{_decode_device.1} parent=1 // pred_fallthru
      _
    // Predicated region
    $region22: #{_decode_device.1} parent=1 // pred_check
      _
    $region23: #{_decode_device.1} parent=1 // pred_check_branch
      %30 = sbr.rel (0) target = $region25
    $region24: #{_decode_device.1} parent=1 // pred_region
      _
    $region25: #{_decode_device.1} parent=1 // pred_fallthru
      _
    // Predicated region
    $region26: #{_decode_device.1} parent=1 // pred_check
      _
    $region27: #{_decode_device.1} parent=1 // pred_check_branch
      %32 = sbr.rel (0) target = $region29
    $region28: #{_decode_device.1} parent=1 // pred_region
      _
    $region29: #{_decode_device.1} parent=1 // pred_fallthru
      _
    // Predicated region
    $region30: #{_decode_device.1} parent=1 // pred_check
      _
    $region31: #{_decode_device.1} parent=1 // pred_check_branch
      %34 = sbr.rel (0) target = $region33
    $region32: #{_decode_device.1} parent=1 // pred_region
      _
    $region33: #{_decode_device.1} parent=1 // pred_fallthru
      _
    %v36 = vld [vmem:[%s0] sm:$0x1]
    %v37 = vld [vmem:[%s2] sm:$0xf]
    %v38 = vld [vmem:[%s2 + $0x4] sm:$0xf]
    %v39 = vld [vmem:[%s2 + $0x8] sm:$0xf]
    %v40 = vld [vmem:[%s2 + $0xc] sm:$0xf]
    %v41 = vld [vmem:[%s4] sm:$0x1]
    %v46 = vunpack.c.l.b16 %v37
    %v47 = vunpack.c.l.b16 %v38
    %v48 = vunpack.c.l.b16 %v39
    %v49 = vunpack.c.l.b16 %v40
    %v50 = vpack.c.b16 %v47, %v46
    %v51 = vpack.c.b16 %v49, %v48
    %vm54 = vcmask 261120
    %v56 = vsel %vm54, %v36, 0
    %58 = vmatpush.bf16.msra.mxu0 0
    %59 = vmatpush.bf16.msra.mxu0 0
    %60 = vmatpush.bf16.msra.mxu0 0
    %61 = vmatpush.bf16.msra.mxu0 0
    %62 = vmatpush.bf16.msra.mxu0 0
    %63 = vmatpush.bf16.msra.mxu0 0
    %64 = vmatpush.bf16.msra.mxu0 %v51
    %65 = vmatpush.bf16.msra.mxu0 %v50
    %66 = vmatmul.bf16.gmra.mxu0 %v56
    %v67 = vpop.f32.mrf.mxu0
    %v68 = vadd.f32 %v41, %v67
    %v69 = vpop.f32.mrf.mxu0
    %70 = vdwg.mxu0
    %v71 = vld [vmem:[%s3] sm:$0xf]
    %v72 = vld [vmem:[%s3 + $0x4] sm:$0xf]
    %v73 = vld [vmem:[%s3 + $0x8] sm:$0xf]
    %v74 = vld [vmem:[%s3 + $0xc] sm:$0xf]
    %v75 = vld [vmem:[%s5] sm:$0x1]
    %v76 = vld [vmem:[%s1] sm:$0x1]
    %v77 = vpack.c.bf16 %v76, %v76
    %v82 = vunpack.c.l.b16 %v71
    %v83 = vunpack.c.l.b16 %v72
    %v84 = vunpack.c.l.b16 %v73
    %v85 = vunpack.c.l.b16 %v74
    %v86 = vpack.c.b16 %v83, %v82
    %v87 = vpack.c.b16 %v85, %v84
    %v91 = vsel %vm54, %v77, 0
    %93 = vmatpush.bf16.msra.mxu0 0
    %94 = vmatpush.bf16.msra.mxu0 0
    %95 = vmatpush.bf16.msra.mxu0 0
    %96 = vmatpush.bf16.msra.mxu0 0
    %97 = vmatpush.bf16.msra.mxu0 0
    %98 = vmatpush.bf16.msra.mxu0 0
    %99 = vmatpush.bf16.msra.mxu0 %v87
    %100 = vmatpush.bf16.msra.mxu0 %v86
    %101 = vmatmul.bf16.gmra.mxu0 %v91
    %v102 = vpop.f32.mrf.mxu0
    %v103 = vadd.f32 %v75, %v102
    %v104 = vpop.f32.mrf.mxu0
    %105 = vdwg.mxu0
    %v106 = vadd.f32 %v68, %v103
    %v107 = vxor.u32 %v106, 2147483648
    %v108 = vmul.f32 %v107, 1.442695
    %v109 = vpow.pop %v108
    %v110 = vadd.f32 %v109, 1.0
    %v111 = vrcp.pop %v110
    %v112 = vmul.f32 %v110, %v111
    %v113 = vsub.f32 1.0, %v112
    %v114 = vmul.f32 %v111, %v113
    %v115 = vadd.f32 %v111, %v114
    %vm116 = vweird.f32 %v110
    %vm117 = vweird.f32 %v111
    %vm118 = vmor %vm116, %vm117
    %v119 = vsel %vm118, %v111, %v115
    %v120 = vand.u32 2147483647, %v110
    %vm121 = vcmp.eq.f32.partialorder %v120, 8.507059e+37
    %v122 = vand.u32 %v110, 2147483648
    %v123 = vor.u32 1.1754944e-38, %v122
    %v124 = vsel %vm121, %v123, %v119
    %v125 = vmul.f32 1.0, %v124
    %127 = vrot.lane.b32.xlu0 %v103, 64
    %v128 = vpop.permute.xlu0 %127
    %v130 = vmul.f32 %v125, %v128
    %132 = vrot.lane.b32.xlu0 %v130, 64
    %v133 = vpop.permute.xlu0 %132
    %v135 = vadd.f32 %v68, %v133
    %v136 = vtanh.pop %v135
    %v137 = vsub.f32 1.0, %v125
    %139 = vrot.lane.b32.xlu0 %v136, 96
    %v140 = vpop.permute.xlu0 %139
    %v142 = vmul.f32 %v137, %v140
    %v144 = vperm.slane %v76, 0
    %145 = vrot.lane.b32.xlu0 %v144, 32
    %v146 = vpop.permute.xlu0 %145
    %v148 = vmul.f32 %v125, %v146
    %v149 = vadd.f32 %v142, %v148
    %v150 = vpack.c.bf16 %v149, %v149
    %152 = vrot.lane.b32.xlu0 %v150, 96
    %v153 = vpop.permute.xlu0 %152
    %v155 = vsel %vm54, %v153, 0
    %157 = vmatpush.bf16.msra.mxu0 0
    %158 = vmatpush.bf16.msra.mxu0 0
    %159 = vmatpush.bf16.msra.mxu0 0
    %160 = vmatpush.bf16.msra.mxu0 0
    %161 = vmatpush.bf16.msra.mxu0 0
    %162 = vmatpush.bf16.msra.mxu0 0
    %163 = vmatpush.bf16.msra.mxu0 %v87
    %164 = vmatpush.bf16.msra.mxu0 %v86
    %165 = vmatmul.bf16.gmra.mxu0 %v155
    %v166 = vpop.f32.mrf.mxu0
    %v167 = vadd.f32 %v75, %v166
    %v168 = vpop.f32.mrf.mxu0
    %169 = vdwg.mxu0
    %v170 = vadd.f32 %v68, %v167
    %v171 = vxor.u32 %v170, 2147483648
    %v172 = vmul.f32 %v171, 1.442695
    %v173 = vpow.pop %v172
    %v174 = vadd.f32 %v173, 1.0
    %v175 = vrcp.pop %v174
    %v176 = vmul.f32 %v174, %v175
    %v177 = vsub.f32 1.0, %v176
    %v178 = vmul.f32 %v175, %v177
    %v179 = vadd.f32 %v175, %v178
    %vm180 = vweird.f32 %v174
    %vm181 = vweird.f32 %v175
    %vm182 = vmor %vm180, %vm181
    %v183 = vsel %vm182, %v175, %v179
    %v184 = vand.u32 2147483647, %v174
    %vm185 = vcmp.eq.f32.partialorder %v184, 8.507059e+37
    %v186 = vand.u32 %v174, 2147483648
    %v187 = vor.u32 1.1754944e-38, %v186
    %v188 = vsel %vm185, %v187, %v183
    %v189 = vmul.f32 1.0, %v188
    %191 = vrot.lane.b32.xlu0 %v167, 64
    %v192 = vpop.permute.xlu0 %191
    %v194 = vmul.f32 %v189, %v192
    %196 = vrot.lane.b32.xlu0 %v194, 64
    %v197 = vpop.permute.xlu0 %196
    %v199 = vadd.f32 %v68, %v197
    %v200 = vtanh.pop %v199
    %v201 = vsub.f32 1.0, %v189
    %203 = vrot.lane.b32.xlu0 %v200, 96
    %v204 = vpop.permute.xlu0 %203
    %v206 = vmul.f32 %v201, %v204
    %v207 = vmul.f32 %v189, %v149
    %v208 = vadd.f32 %v206, %v207
    %v209 = vpack.c.bf16 %v208, %v208
    %211 = vrot.lane.b32.xlu0 %v209, 96
    %v212 = vpop.permute.xlu0 %211
    %v214 = vsel %vm54, %v212, 0
    %216 = vmatpush.bf16.msra.mxu0 0
    %217 = vmatpush.bf16.msra.mxu0 0
    %218 = vmatpush.bf16.msra.mxu0 0
    %219 = vmatpush.bf16.msra.mxu0 0
    %220 = vmatpush.bf16.msra.mxu0 0
    %221 = vmatpush.bf16.msra.mxu0 0
    %222 = vmatpush.bf16.msra.mxu0 %v87
    %223 = vmatpush.bf16.msra.mxu0 %v86
    %224 = vmatmul.bf16.gmra.mxu0 %v214
    %v225 = vpop.f32.mrf.mxu0
    %v226 = vadd.f32 %v75, %v225
    %v227 = vpop.f32.mrf.mxu0
    %228 = vdwg.mxu0
    %v229 = vadd.f32 %v68, %v226
    %v230 = vxor.u32 %v229, 2147483648
    %v231 = vmul.f32 %v230, 1.442695
    %v232 = vpow.pop %v231
    %v233 = vadd.f32 %v232, 1.0
    %v234 = vrcp.pop %v233
    %v235 = vmul.f32 %v233, %v234
    %v236 = vsub.f32 1.0, %v235
    %v237 = vmul.f32 %v234, %v236
    %v238 = vadd.f32 %v234, %v237
    %vm239 = vweird.f32 %v233
    %vm240 = vweird.f32 %v234
    %vm241 = vmor %vm239, %vm240
    %v242 = vsel %vm241, %v234, %v238
    %v243 = vand.u32 2147483647, %v233
    %vm244 = vcmp.eq.f32.partialorder %v243, 8.507059e+37
    %v245 = vand.u32 %v233, 2147483648
    %v246 = vor.u32 1.1754944e-38, %v245
    %v247 = vsel %vm244, %v246, %v242
    %v248 = vmul.f32 1.0, %v247
    %250 = vrot.lane.b32.xlu0 %v226, 64
    %v251 = vpop.permute.xlu0 %250
    %v253 = vmul.f32 %v248, %v251
    %255 = vrot.lane.b32.xlu0 %v253, 64
    %v256 = vpop.permute.xlu0 %255
    %v258 = vadd.f32 %v68, %v256
    %v259 = vtanh.pop %v258
    %v260 = vsub.f32 1.0, %v248
    %262 = vrot.lane.b32.xlu0 %v259, 96
    %v263 = vpop.permute.xlu0 %262
    %v265 = vmul.f32 %v260, %v263
    %v266 = vmul.f32 %v248, %v208
    %v267 = vadd.f32 %v265, %v266
    %v268 = vpack.c.bf16 %v267, %v267
    %270 = vrot.lane.b32.xlu0 %v268, 96
    %v271 = vpop.permute.xlu0 %270
    %v273 = vsel %vm54, %v271, 0
    %275 = vmatpush.bf16.msra.mxu0 0
    %276 = vmatpush.bf16.msra.mxu0 0
    %277 = vmatpush.bf16.msra.mxu0 0
    %278 = vmatpush.bf16.msra.mxu0 0
    %279 = vmatpush.bf16.msra.mxu0 0
    %280 = vmatpush.bf16.msra.mxu0 0
    %281 = vmatpush.bf16.msra.mxu0 %v87
    %282 = vmatpush.bf16.msra.mxu0 %v86
    %283 = vmatmul.bf16.gmra.mxu0 %v273
    %v284 = vpop.f32.mrf.mxu0
    %v285 = vadd.f32 %v75, %v284
    %v286 = vpop.f32.mrf.mxu0
    %287 = vdwg.mxu0
    %v288 = vadd.f32 %v68, %v285
    %v289 = vxor.u32 %v288, 2147483648
    %v290 = vmul.f32 %v289, 1.442695
    %v291 = vpow.pop %v290
    %v292 = vadd.f32 %v291, 1.0
    %v293 = vrcp.pop %v292
    %v294 = vmul.f32 %v292, %v293
    %v295 = vsub.f32 1.0, %v294
    %v296 = vmul.f32 %v293, %v295
    %v297 = vadd.f32 %v293, %v296
    %vm298 = vweird.f32 %v292
    %vm299 = vweird.f32 %v293
    %vm300 = vmor %vm298, %vm299
    %v301 = vsel %vm300, %v293, %v297
    %v302 = vand.u32 2147483647, %v292
    %vm303 = vcmp.eq.f32.partialorder %v302, 8.507059e+37
    %v304 = vand.u32 %v292, 2147483648
    %v305 = vor.u32 1.1754944e-38, %v304
    %v306 = vsel %vm303, %v305, %v301
    %v307 = vmul.f32 1.0, %v306
    %309 = vrot.lane.b32.xlu0 %v285, 64
    %v310 = vpop.permute.xlu0 %309
    %v312 = vmul.f32 %v307, %v310
    %314 = vrot.lane.b32.xlu0 %v312, 64
    %v315 = vpop.permute.xlu0 %314
    %v317 = vadd.f32 %v68, %v315
    %v318 = vtanh.pop %v317
    %v319 = vsub.f32 1.0, %v307
    %321 = vrot.lane.b32.xlu0 %v318, 96
    %v322 = vpop.permute.xlu0 %321
    %v324 = vmul.f32 %v319, %v322
    %v325 = vmul.f32 %v307, %v267
    %v326 = vadd.f32 %v324, %v325
    %v327 = vpack.c.bf16 %v326, %v326
    %329 = vrot.lane.b32.xlu0 %v327, 96
    %v330 = vpop.permute.xlu0 %329
    %v332 = vsel %vm54, %v330, 0
    %334 = vmatpush.bf16.msra.mxu0 0
    %335 = vmatpush.bf16.msra.mxu0 0
    %336 = vmatpush.bf16.msra.mxu0 0
    %337 = vmatpush.bf16.msra.mxu0 0
    %338 = vmatpush.bf16.msra.mxu0 0
    %339 = vmatpush.bf16.msra.mxu0 0
    %340 = vmatpush.bf16.msra.mxu0 %v87
    %341 = vmatpush.bf16.msra.mxu0 %v86
    %342 = vmatmul.bf16.gmra.mxu0 %v332
    %v343 = vpop.f32.mrf.mxu0
    %v344 = vadd.f32 %v75, %v343
    %v345 = vpop.f32.mrf.mxu0
    %346 = vdwg.mxu0
    %v347 = vadd.f32 %v68, %v344
    %v348 = vxor.u32 %v347, 2147483648
    %v349 = vmul.f32 %v348, 1.442695
    %v350 = vpow.pop %v349
    %v351 = vadd.f32 %v350, 1.0
    %v352 = vrcp.pop %v351
    %v353 = vmul.f32 %v351, %v352
    %v354 = vsub.f32 1.0, %v353
    %v355 = vmul.f32 %v352, %v354
    %v356 = vadd.f32 %v352, %v355
    %vm357 = vweird.f32 %v351
    %vm358 = vweird.f32 %v352
    %vm359 = vmor %vm357, %vm358
    %v360 = vsel %vm359, %v352, %v356
    %v361 = vand.u32 2147483647, %v351
    %vm362 = vcmp.eq.f32.partialorder %v361, 8.507059e+37
    %v363 = vand.u32 %v351, 2147483648
    %v364 = vor.u32 1.1754944e-38, %v363
    %v365 = vsel %vm362, %v364, %v360
    %v366 = vmul.f32 1.0, %v365
    %368 = vrot.lane.b32.xlu0 %v344, 64
    %v369 = vpop.permute.xlu0 %368
    %v371 = vmul.f32 %v366, %v369
    %373 = vrot.lane.b32.xlu0 %v371, 64
    %v374 = vpop.permute.xlu0 %373
    %v376 = vadd.f32 %v68, %v374
    %v377 = vtanh.pop %v376
    %v378 = vsub.f32 1.0, %v366
    %380 = vrot.lane.b32.xlu0 %v377, 96
    %v381 = vpop.permute.xlu0 %380
    %v383 = vmul.f32 %v378, %v381
    %v384 = vmul.f32 %v366, %v326
    %v385 = vadd.f32 %v383, %v384
    %v386 = vpack.c.bf16 %v385, %v385
    %388 = vrot.lane.b32.xlu0 %v386, 96
    %v389 = vpop.permute.xlu0 %388
    %v391 = vsel %vm54, %v389, 0
    %393 = vmatpush.bf16.msra.mxu0 0
    %394 = vmatpush.bf16.msra.mxu0 0
    %395 = vmatpush.bf16.msra.mxu0 0
    %396 = vmatpush.bf16.msra.mxu0 0
    %397 = vmatpush.bf16.msra.mxu0 0
    %398 = vmatpush.bf16.msra.mxu0 0
    %399 = vmatpush.bf16.msra.mxu0 %v87
    %400 = vmatpush.bf16.msra.mxu0 %v86
    %401 = vmatmul.bf16.gmra.mxu0 %v391
    %v402 = vpop.f32.mrf.mxu0
    %v403 = vadd.f32 %v75, %v402
    %v404 = vpop.f32.mrf.mxu0
    %405 = vdwg.mxu0
    %v406 = vadd.f32 %v68, %v403
    %v407 = vxor.u32 %v406, 2147483648
    %v408 = vmul.f32 %v407, 1.442695
    %v409 = vpow.pop %v408
    %v410 = vadd.f32 %v409, 1.0
    %v411 = vrcp.pop %v410
    %v412 = vmul.f32 %v410, %v411
    %v413 = vsub.f32 1.0, %v412
    %v414 = vmul.f32 %v411, %v413
    %v415 = vadd.f32 %v411, %v414
    %vm416 = vweird.f32 %v410
    %vm417 = vweird.f32 %v411
    %vm418 = vmor %vm416, %vm417
    %v419 = vsel %vm418, %v411, %v415
    %v420 = vand.u32 2147483647, %v410
    %vm421 = vcmp.eq.f32.partialorder %v420, 8.507059e+37
    %v422 = vand.u32 %v410, 2147483648
    %v423 = vor.u32 1.1754944e-38, %v422
    %v424 = vsel %vm421, %v423, %v419
    %v425 = vmul.f32 1.0, %v424
    %427 = vrot.lane.b32.xlu0 %v403, 64
    %v428 = vpop.permute.xlu0 %427
    %v430 = vmul.f32 %v425, %v428
    %432 = vrot.lane.b32.xlu0 %v430, 64
    %v433 = vpop.permute.xlu0 %432
    %v435 = vadd.f32 %v68, %v433
    %v436 = vtanh.pop %v435
    %v437 = vsub.f32 1.0, %v425
    %439 = vrot.lane.b32.xlu0 %v436, 96
    %v440 = vpop.permute.xlu0 %439
    %v442 = vmul.f32 %v437, %v440
    %v443 = vmul.f32 %v425, %v385
    %v444 = vadd.f32 %v442, %v443
    %v445 = vpack.c.bf16 %v444, %v444
    %447 = vrot.lane.b32.xlu0 %v445, 96
    %v448 = vpop.permute.xlu0 %447
    %v450 = vsel %vm54, %v448, 0
    %452 = vmatpush.bf16.msra.mxu0 0
    %453 = vmatpush.bf16.msra.mxu0 0
    %454 = vmatpush.bf16.msra.mxu0 0
    %455 = vmatpush.bf16.msra.mxu0 0
    %456 = vmatpush.bf16.msra.mxu0 0
    %457 = vmatpush.bf16.msra.mxu0 0
    %458 = vmatpush.bf16.msra.mxu0 %v87
    %459 = vmatpush.bf16.msra.mxu0 %v86
    %460 = vmatmul.bf16.gmra.mxu0 %v450
    %v461 = vpop.f32.mrf.mxu0
    %v462 = vadd.f32 %v75, %v461
    %v463 = vpop.f32.mrf.mxu0
    %464 = vdwg.mxu0
    %v465 = vadd.f32 %v68, %v462
    %v466 = vxor.u32 %v465, 2147483648
    %v467 = vmul.f32 %v466, 1.442695
    %v468 = vpow.pop %v467
    %v469 = vadd.f32 %v468, 1.0
    %v470 = vrcp.pop %v469
    %v471 = vmul.f32 %v469, %v470
    %v472 = vsub.f32 1.0, %v471
    %v473 = vmul.f32 %v470, %v472
    %v474 = vadd.f32 %v470, %v473
    %vm475 = vweird.f32 %v469
    %vm476 = vweird.f32 %v470
    %vm477 = vmor %vm475, %vm476
    %v478 = vsel %vm477, %v470, %v474
    %v479 = vand.u32 2147483647, %v469
    %vm480 = vcmp.eq.f32.partialorder %v479, 8.507059e+37
    %v481 = vand.u32 %v469, 2147483648
    %v482 = vor.u32 1.1754944e-38, %v481
    %v483 = vsel %vm480, %v482, %v478
    %v484 = vmul.f32 1.0, %v483
    %486 = vrot.lane.b32.xlu0 %v462, 64
    %v487 = vpop.permute.xlu0 %486
    %v489 = vmul.f32 %v484, %v487
    %491 = vrot.lane.b32.xlu0 %v489, 64
    %v492 = vpop.permute.xlu0 %491
    %v494 = vadd.f32 %v68, %v492
    %v495 = vtanh.pop %v494
    %v496 = vsub.f32 1.0, %v484
    %498 = vrot.lane.b32.xlu0 %v495, 96
    %v499 = vpop.permute.xlu0 %498
    %v501 = vmul.f32 %v496, %v499
    %v502 = vmul.f32 %v484, %v444
    %v503 = vadd.f32 %v501, %v502
    %v504 = vpack.c.bf16 %v503, %v503
    %506 = vrot.lane.b32.xlu0 %v504, 96
    %v507 = vpop.permute.xlu0 %506
    %v509 = vsel %vm54, %v507, 0
    %511 = vmatpush.bf16.msra.mxu0 0
    %512 = vmatpush.bf16.msra.mxu0 0
    %513 = vmatpush.bf16.msra.mxu0 0
    %514 = vmatpush.bf16.msra.mxu0 0
    %515 = vmatpush.bf16.msra.mxu0 0
    %516 = vmatpush.bf16.msra.mxu0 0
    %517 = vmatpush.bf16.msra.mxu0 %v87
    %518 = vmatpush.bf16.msra.mxu0 %v86
    %519 = vmatmul.bf16.gmra.mxu0 %v509
    %v520 = vpop.f32.mrf.mxu0
    %v521 = vadd.f32 %v75, %v520
    %v522 = vpop.f32.mrf.mxu0
    %523 = vdwg.mxu0
    %v524 = vadd.f32 %v68, %v521
    %v525 = vxor.u32 %v524, 2147483648
    %v526 = vmul.f32 %v525, 1.442695
    %v527 = vpow.pop %v526
    %v528 = vadd.f32 %v527, 1.0
    %v529 = vrcp.pop %v528
    %v530 = vmul.f32 %v528, %v529
    %v531 = vsub.f32 1.0, %v530
    %v532 = vmul.f32 %v529, %v531
    %v533 = vadd.f32 %v529, %v532
    %vm534 = vweird.f32 %v528
    %vm535 = vweird.f32 %v529
    %vm536 = vmor %vm534, %vm535
    %v537 = vsel %vm536, %v529, %v533
    %v538 = vand.u32 2147483647, %v528
    %vm539 = vcmp.eq.f32.partialorder %v538, 8.507059e+37
    %v540 = vand.u32 %v528, 2147483648
    %v541 = vor.u32 1.1754944e-38, %v540
    %v542 = vsel %vm539, %v541, %v537
    %v543 = vmul.f32 1.0, %v542
    %545 = vrot.lane.b32.xlu0 %v521, 64
    %v546 = vpop.permute.xlu0 %545
    %v548 = vmul.f32 %v543, %v546
    %550 = vrot.lane.b32.xlu0 %v548, 64
    %v551 = vpop.permute.xlu0 %550
    %v553 = vadd.f32 %v68, %v551
    %v554 = vtanh.pop %v553
    %v555 = vsub.f32 1.0, %v543
    %557 = vrot.lane.b32.xlu0 %v554, 96
    %v558 = vpop.permute.xlu0 %557
    %v560 = vmul.f32 %v555, %v558
    %v561 = vmul.f32 %v543, %v503
    %v562 = vadd.f32 %v560, %v561
    %v564 = vrot.slane %v208, 7
    %v567 = vrot.slane %v267, 6
    %v570 = vrot.slane %v326, 5
    %v573 = vrot.slane %v385, 4
    %v576 = vrot.slane %v444, 3
    %v579 = vrot.slane %v503, 2
    %v582 = vrot.slane %v562, 1
    %vm584 = vcmask 1040384
    %v585 = vsel %vm584, %v149, %v564
    %vm586 = vcmask 1041408
    %v587 = vsel %vm586, %v585, %v567
    %vm588 = vcmask 1042432
    %v589 = vsel %vm588, %v587, %v570
    %vm590 = vcmask 1043456
    %v591 = vsel %vm590, %v589, %v573
    %vm592 = vcmask 1044480
    %v593 = vsel %vm592, %v591, %v576
    %vm594 = vcmask 1045504
    %v595 = vsel %vm594, %v593, %v579
    %vm596 = vcmask 1046528
    %v597 = vsel %vm596, %v595, %v582
    %v598 = vpack.c.bf16 %v597, %v597
    %v599 = vld [vmem:[%s6] sm:$0xf]
    %v600 = vld [vmem:[%s6 + $0x4] sm:$0xf]
    %v601 = vld [vmem:[%s6 + $0x8] sm:$0xf]
    %v602 = vld [vmem:[%s6 + $0xc] sm:$0xf]
    %v603 = vld [vmem:[%s7] sm:$0x1]
    %v605 = vperm.slane %v603, 0
    %608 = vrot.lane.b32.xlu0 %v598, 96
    %v609 = vpop.permute.xlu0 %608
    %v614 = vunpack.c.l.b16 %v599
    %v615 = vunpack.c.l.b16 %v600
    %v616 = vunpack.c.l.b16 %v601
    %v617 = vunpack.c.l.b16 %v602
    %v618 = vpack.c.b16 %v615, %v614
    %v619 = vpack.c.b16 %v617, %v616
    %v623 = vsel %vm54, %v609, 0
    %625 = vmatpush.bf16.msra.mxu0 0
    %626 = vmatpush.bf16.msra.mxu0 0
    %627 = vmatpush.bf16.msra.mxu0 0
    %628 = vmatpush.bf16.msra.mxu0 0
    %629 = vmatpush.bf16.msra.mxu0 0
    %630 = vmatpush.bf16.msra.mxu0 0
    %631 = vmatpush.bf16.msra.mxu0 %v619
    %632 = vmatpush.bf16.msra.mxu0 %v618
    %633 = vmatmul.bf16.gmra.mxu0 %v623
    %v634 = vpop.f32.mrf.mxu0
    %v635 = vadd.f32 %v605, %v634
    %v636 = vpop.f32.mrf.mxu0
    %637 = vdwg.mxu0
    %638 = vmax.xlane.f32.xlu0 %v635
    %v639 = vpop.xlane.xlu0 %638
    %v640 = vsub.f32 %v635, %v639
    %v641 = vmul.f32 %v640, 1.442695
    %v642 = vpow.pop %v641
    %643 = vadd.xlane.f32.xlu0 %v642
    %v644 = vpop.xlane.xlu0 %643
    %v645 = vlog2.pop %v644
    %v646 = vmul.f32 %v645, 0.6931472
    %v647 = vsub.f32 %v640, %v646
    %648 = vst [vmem:[#allocation2] sm:$0xff] %v647
    %v649 = vlaneseq
    %v650 = vand.u32 %v649, 127
    %vm651 = vcmp.eq.f32.partialorder %v635, %v639
    %v652 = vsel %vm651, %v650, 128
    %v653 = vand.u32 %v652, 65535
    %v654 = vshra.s32 %v652, 16
    %v655 = vcvt.s32.f32 %v653
    %v656 = vcvt.s32.f32 %v654
    %657 = vmin.xlane.f32.xlu0 %v656
    %v658 = vpop.xlane.xlu0 %657
    %vm659 = vcmp.eq.f32.partialorder %v656, %v658
    %v660 = vsel %vm659, %v655, inf
    %661 = vmin.xlane.f32.xlu0 %v660
    %v662 = vpop.xlane.xlu0 %661
    %v663 = vcvt.f32.s32 %v662
    %v664 = vcvt.f32.s32 %v658
    %v665 = vshll.u32 %v664, 16
    %v666 = vadd.s32 %v665, %v663
    %vm667 = vcmask 7168
    %668 = vst.msk [vmem:[%s10] sm:$0xff] %vm667, %v666
    %v669 = vlaneseq
    %v670 = vshrl.u32 %v669, 7
    %vm671 = vcmp.eq.s32.totalorder %v666, 1
    %v672 = vsel %vm671, %v670, 8
    %v673 = vrot.slane %v672, 4
    %vm674 = vcmp.lt.s32.totalorder %v672, %v673
    %v675 = vsel %vm674, %v672, %v673
    %v676 = vrot.slane %v675, 2
    %vm677 = vcmp.lt.s32.totalorder %v675, %v676
    %v678 = vsel %vm677, %v675, %v676
    %v679 = vrot.slane %v678, 1
    %vm680 = vcmp.lt.s32.totalorder %v678, %v679
    %v681 = vsel %vm680, %v678, %v679
    %v682 = vadd.s32 %v681, 1
    %vm683 = vcmp.lt.s32.totalorder %v682, 8
    %v684 = vsel %vm683, %v682, 8
    %vm685 = vcmask 0
    %686 = vst.msk [vmem:[#allocation6] sm:$0x1] %vm685, %v684
    %v687 = vsub.s32 %v684, 1
    %vm688 = vcmp.eq.s32.totalorder %v670, %v687
    %v689 = vsel %vm688, 1, 0
    %v690 = vcvt.s32.f32 %v689
    %v691 = vmul.f32 %v597, %v690
    %vm692 = vcmask 523520
    %v693 = vsel %vm692, %v691, 0.0
    %v694 = vrot.slane %v693, 4
    %v695 = vadd.f32 %v693, %v694
    %v696 = vrot.slane %v695, 2
    %v697 = vadd.f32 %v695, %v696
    %v698 = vrot.slane %v697, 1
    %v699 = vadd.f32 %v697, %v698
    %701 = vrot.lane.b32.xlu0 %v699, 96
    %v702 = vpop.permute.xlu0 %701
    %vm704 = vcmask 253952
    %705 = vst.msk [vmem:[#allocation4] sm:$0x1] %vm704, %v702
    // Predicated region
    $region34: #{_decode_device.1} parent=1 // pred_check
      _
    $region35: #{_decode_device.1} parent=1 // pred_check_branch
      %707 = sbr.rel (0) target = $region37
    $region36: #{_decode_device.1} parent=1 // pred_region
      %709 = vsyncadd [#allocation3], 0
      %s711 = sshll.u32 [#allocation2], 4
      %s712 = int_to_ptr.vmem [resolvable:$true] %s711
      %s713 = sshll.u32 %s8, 4
      %s714 = int_to_ptr.hbm [resolvable:$true] %s713
      %716 = dma.vmem_to_hbm [thread:$0]  %s712, 128, %s714, [#allocation3]
    $region37: #{_decode_device.1} parent=1 // pred_fallthru
      _
    // Predicated region
    $region38: #{_decode_device.1} parent=1 // pred_check
      _
    $region39: #{_decode_device.1} parent=1 // pred_check_branch
      %718 = sbr.rel (0) target = $region41
    $region40: #{_decode_device.1} parent=1 // pred_region
      %720 = vsyncadd [#allocation5], 0
      %s722 = sshll.u32 [#allocation4], 4
      %s723 = int_to_ptr.vmem [resolvable:$true] %s722
      %s724 = sshll.u32 %s9, 4
      %s725 = int_to_ptr.hbm [resolvable:$true] %s724
      %727 = dma.vmem_to_hbm [thread:$0]  %s723, 16, %s725, [#allocation5]
    $region41: #{_decode_device.1} parent=1 // pred_fallthru
      _
    // Predicated region
    $region42: #{_decode_device.1} parent=1 // pred_check
      _
    $region43: #{_decode_device.1} parent=1 // pred_check_branch
      %729 = sbr.rel (0) target = $region45
    $region44: #{_decode_device.1} parent=1 // pred_region
      _
    $region45: #{_decode_device.1} parent=1 // pred_fallthru
      _
    // Predicated region
    $region46: #{_decode_device.1} parent=1 // pred_check
      _
    $region47: #{_decode_device.1} parent=1 // pred_check_branch
      %731 = sbr.rel (0) target = $region49
    $region48: #{_decode_device.1} parent=1 // pred_region
      %733 = vsyncadd [#allocation5], 0
      %s735 = sshll.u32 [#allocation6], 4
      %s736 = int_to_ptr.vmem [resolvable:$true] %s735
      %s737 = sshll.u32 %s11, 4
      %s738 = int_to_ptr.hbm [resolvable:$true] %s737
      %740 = dma.vmem_to_hbm [thread:$0]  %s736, 16, %s738, [#allocation5]
    $region49: #{_decode_device.1} parent=1 // pred_fallthru
      _
    // Predicated region
    $region50: #{_decode_device.1} parent=1 // pred_check
      _
    $region51: #{_decode_device.1} parent=1 // pred_check_branch
      %742 = sbr.rel (0) target = $region53
    $region52: #{_decode_device.1} parent=1 // pred_region
      %744 = dma.done [#allocation3], 128
    $region53: #{_decode_device.1} parent=1 // pred_fallthru
      _
    // Predicated region
    $region54: #{_decode_device.1} parent=1 // pred_check
      _
    $region55: #{_decode_device.1} parent=1 // pred_check_branch
      %746 = sbr.rel (0) target = $region57
    $region56: #{_decode_device.1} parent=1 // pred_region
      %748 = dma.done [#allocation5], 16
    $region57: #{_decode_device.1} parent=1 // pred_fallthru
      _
    // Predicated region
    $region58: #{_decode_device.1} parent=1 // pred_check
      _
    $region59: #{_decode_device.1} parent=1 // pred_check_branch
      %750 = sbr.rel (0) target = $region61
    $region60: #{_decode_device.1} parent=1 // pred_region
      _
    $region61: #{_decode_device.1} parent=1 // pred_fallthru
      _
    // Predicated region
    $region62: #{_decode_device.1} parent=1 // pred_check
      _
    $region63: #{_decode_device.1} parent=1 // pred_check_branch
      %752 = sbr.rel (0) target = $region65
    $region64: #{_decode_device.1} parent=1 // pred_region
      %754 = dma.done [#allocation5], 16
    $region65: #{_decode_device.1} parent=1 // pred_fallthru
      _
    %755 = vsyncpa [#allocation3], 1
    %756 = vsyncpa [#allocation5], 1

</llo_original>
